<compile_context>
chip_gen: v7x
topology: tpu7x:2x2x1
jax: 0.10.0
libtpu: 0.0.40
codegen_flags: <defaults>
</compile_context>

<pallas_src>
import jax
import jax.numpy as jnp
from jax.experimental import pallas as pl
from jax.experimental.pallas import tpu as pltpu


# --------------------------------------------------------------------------
# Path 1: single HBM -> HBM DMA (default materialize kernel).
# --------------------------------------------------------------------------
def _hbm_copy_kernel(x_hbm, o_hbm, sem):
    cp = pltpu.make_async_copy(x_hbm, o_hbm, sem)
    cp.start()
    cp.wait()


def _hbm_dma_copy(x: jax.Array) -> jax.Array:
    return pl.pallas_call(
        _hbm_copy_kernel,
        out_shape=jax.ShapeDtypeStruct(x.shape, x.dtype),
        in_specs=[pl.BlockSpec(memory_space=pl.ANY)],
        out_specs=pl.BlockSpec(memory_space=pl.ANY),
        scratch_shapes=[pltpu.SemaphoreType.DMA(())],
    )(x)


# --------------------------------------------------------------------------
# Path 2: tiled, lane-dense VMEM streaming copy.
# --------------------------------------------------------------------------
def _identity_kernel(x_ref, o_ref):
    # Pass-through: action = x (elementwise copy of the current VMEM tile).
    o_ref[...] = x_ref[...]


def _pick_lane_width(total: int, max_w: int = 8192) -> int | None:
    """Largest multiple of 128 that divides `total` (<= max_w), else None."""
    hi = min(max_w, total)
    hi -= hi % 128
    for w in range(hi, 127, -128):
        if total % w == 0:
            return w
    return None


def _tiled_copy(x: jax.Array) -> jax.Array:
    orig_shape = x.shape
    total = x.size
    itemsize = jnp.dtype(x.dtype).itemsize

    # Lane-dense presentation: wide 128-multiple rows -> unmasked vst stores.
    w = _pick_lane_width(total)
    if w is None:
        # Lane-sparse case (numel not a multiple of 128): an opaque Pallas
        # launch with masked stores loses to a plain XLA copy (which can
        # also fuse with neighbors).
        return jnp.copy(x)

    rows, cols = total // w, w
    x2 = x.reshape(rows, cols)

    # Dtype-aware sublane granularity (sub-32-bit dtypes pack along sublanes).
    sub = {4: 8, 2: 16, 1: 32}.get(itemsize, 8)

    # Generation-aware VMEM budget. Cap at 32 MiB scoped, which is safe on
    # v5e/v6e (128 MiB physical) and v7x (64 MiB physical, 32 MiB scoped).
    try:
        phys_vmem = pltpu.get_tpu_info().vmem_capacity_bytes
    except Exception:  # pragma: no cover - conservative fallback
        phys_vmem = 128 * 1024 * 1024
    vmem_limit = min(phys_vmem // 2, 32 * 1024 * 1024)

    # in + out blocks, each double-buffered -> 4x tile; keep ~25% headroom.
    tile_budget = (vmem_limit * 3 // 4) // 4
    row_bytes = cols * itemsize
    max_rows = max(sub, tile_budget // row_bytes)

    tb = min(rows, max_rows)
    # Keep at least 2 balanced grid steps so v7x's second TensorCore has work.
    if rows >= 2 * sub:
        tb = min(tb, pl.cdiv(rows, 2))
    if tb < rows:
        tb = max(sub, (tb // sub) * sub)
        tb = min(tb, max(sub, max_rows))  # clamp after rounding

    grid = (pl.cdiv(rows, tb),)
    y2 = pl.pallas_call(
        _identity_kernel,
        out_shape=jax.ShapeDtypeStruct((rows, cols), x2.dtype),
        grid=grid,
        in_specs=[pl.BlockSpec((tb, cols), lambda i: (i, 0))],
        out_specs=pl.BlockSpec((tb, cols), lambda i: (i, 0)),
        compiler_params=pltpu.CompilerParams(
            # Independent tiles: shards across v7x's 2 TensorCores; neutral
            # on single-core v5e/v6e.
            dimension_semantics=("parallel",),
            vmem_limit_bytes=vmem_limit,
        ),
    )(x2)
    return y2.reshape(orig_shape)


# --------------------------------------------------------------------------
# Forward wrapper (matches DeterministicHead.forward semantics).
# --------------------------------------------------------------------------
def deterministic_head_forward(
    x: jax.Array, n: int, materialize: bool = False, use_dma: bool = True
) -> dict:
    """Pallas implementation of DeterministicHead(n).forward(x).

    Args:
      x: [batch, n] input tensor (the "pre-action" features).
      n: output dimensionality (metadata only; asserted against x).
      materialize: if True, produce a fresh (copied) buffer via a Pallas
        kernel; if False (default), return the input array itself — the
        zero-work path, strictly fastest on every TPU generation.
      use_dma: materialize via a single HBM->HBM DMA (default, near-roofline,
        zero VMEM pressure) instead of the tiled VMEM streaming copy.

    Returns:
      dict with key 'action'.
    """
    assert x.ndim == 2 and x.shape[-1] == n, (x.shape, n)
    if not materialize:
        # Pure pass-through head: no parameters, no compute, no HBM traffic.
        return {"action": x}
    if use_dma:
        return {"action": _hbm_dma_copy(x)}
    return {"action": _tiled_copy(x)}


if __name__ == "__main__":
    key = jax.random.PRNGKey(0)
    batch, n = 8, 32  # small deterministic example; batch*n = 256 -> lane-dense path
    x = jax.random.normal(key, (batch, n), dtype=jnp.float32)

    # Default (recommended) path: zero-copy pass-through.
    out_fast = deterministic_head_forward(x, n)
    assert out_fast["action"] is x

    # Materialized path #1: HBM->HBM DMA copy.
    out_dma = deterministic_head_forward(x, n, materialize=True, use_dma=True)
    a_dma = jax.block_until_ready(out_dma["action"])
    assert a_dma.shape == x.shape and a_dma.dtype == x.dtype
    assert bool(jnp.array_equal(a_dma, x))

    # Materialized path #2: tiled lane-dense VMEM copy.
    out_tiled = deterministic_head_forward(x, n, materialize=True, use_dma=False)
    a_tiled = jax.block_until_ready(out_tiled["action"])
    assert a_tiled.shape == x.shape and a_tiled.dtype == x.dtype
    assert bool(jnp.array_equal(a_tiled, x))

    # Non-128-aligned numel -> clean XLA-copy fallback (no lane-sparse launch).
    x_odd = jax.random.normal(key, (3, 5), dtype=jnp.float32)
    out_odd = deterministic_head_forward(x_odd, 5, materialize=True, use_dma=False)
    a_odd = jax.block_until_ready(out_odd["action"])
    assert bool(jnp.array_equal(a_odd, x_odd))

    print("KERNEL_OK")
</pallas_src>

<mosaic_0001>
module attributes {stable_mosaic.version = 11 : i64} {
  func.func @_hbm_copy_kernel(%arg0: memref<8x32xf32, #tpu.memory_space<any>>, %arg1: memref<8x32xf32, #tpu.memory_space<any>>, %arg2: memref<!tpu.dma_semaphore, #tpu.memory_space<semaphore_mem>>) attributes {dimension_semantics = [], scalar_prefetch = 0 : i64, scratch_operands = 1 : i64, tpu.core_type = #tpu.core_type<tc>} {
    tpu.enqueue_dma source(%arg0 : memref<8x32xf32, #tpu.memory_space<any>>) target(%arg1 : memref<8x32xf32, #tpu.memory_space<any>>) target_semaphore(%arg2 : memref<!tpu.dma_semaphore, #tpu.memory_space<semaphore_mem>>)
    tpu.wait_dma2 semaphore(%arg2 : memref<!tpu.dma_semaphore, #tpu.memory_space<semaphore_mem>>) src(%arg0 : memref<8x32xf32, #tpu.memory_space<any>>) dst(%arg1 : memref<8x32xf32, #tpu.memory_space<any>>)
    return
  }
}

</mosaic_0001>

<llo_original>
// kernel: tpu_custom_call.1
$region0: #{tpu_custom_call.1}
  #allocation0 [shape = 'u32[]', space=smem, size = 0x4, offset = 0x4, fixed_abs, tag = 'smem constant byte address 0x4 - core index']
  #allocation1 [shape = 'u32[144,128]{1,0:T(1,128)}', space=vmem, size = 0x12000, scoped, tag = 'internal scratch']
  #allocation2 [shape = 's32[1]{0}', space=sflag, size = 0x4, scoped, tag = 'scratch operand']
  #allocation3 [shape = 's32[]', space=sflag, size = 0x4, offset = 0, fixed_abs, tag = 'sflag constant byte address 0x0 - dummy sync flag']
  #allocation4 [shape = 'u32[0]{0}', space=smem, size = 0, offset = 0, fixed_abs, tag = 'smem constant byte address 0x0 - null']
  %s0 = inlined_call_operand.hbm [shape: f32[8,32], index: 0, kind: input, shape index: {}]
  %s1 = inlined_call_operand.hbm [shape: f32[8,32], index: 1, kind: output, shape index: {}]
  %s2 = sld [smem:[#allocation0]]
  $region2: #{tpu_custom_call.1} parent=0
    _
  %s4 = ssub.s32 1, %s2
  %s5 = scalar_select 0, %s4, %s2
  %s7 = sshll.u32 1, 14
  %s8 = sxor.u32 4294967295, %s7
  %s11 = sshll.u32 3, 24
  %s12 = sxor.u32 4294967295, %s11
  %s13 = sand.u32 0, %s12
  %s15 = sor.u32 %s13, 0
  %18 = dma.general %s0, 128, %s1, [#allocation2], [#allocation3], [#allocation4], %s15, 0
  %s19 = smul.u32 8, 1
  %s20 = sshll.u32 %s19, 4
  %21 = dma.done [#allocation2], %s20
  %22 = vsyncmov [#allocation2]
  %s23 = vpop.sfrf %22
  %p24 = scmp.eq.s32.totalorder %s23, 0
  %p25 = pneg %p24
  %27 = shalt.err (%p25)

</llo_original>
